<compile_context>
chip_gen: v6e
topology: v6e:2x2x1
jax: 0.10.0
libtpu: 0.0.40
codegen_flags: <defaults>
</compile_context>

<pallas_src>
import jax
import jax.numpy as jnp
from jax.experimental import pallas as pl
from jax.experimental.pallas import tpu as pltpu


def _round_up(x, m):
    return (x + m - 1) // m * m


def _mlp_kernel(x_ref,
                w1_ref, b1_ref,
                w2_ref, b2_ref,
                w3_ref, b3_ref,
                w4_ref, b4_ref,
                o_ref):
    """Fused 4-layer MLP for one batch tile; weights stay VMEM-resident."""
    # Layer 1: cast the f32 x tile to bf16 in VMEM (no separate HBM pad/cast
    # pass), MXU matmul with f32 accumulation.
    x = x_ref[...].astype(jnp.bfloat16)                          # (b_tile, D)
    h = jnp.dot(x, w1_ref[...], preferred_element_type=jnp.float32)
    # Fused bias + ReLU + bf16 downcast: any spill of the intermediate to
    # VMEM is half-width (v5e has a single vector-store slot).
    h = jnp.maximum(h + b1_ref[...], 0.0).astype(jnp.bfloat16)   # (b_tile, 256)

    # Layer 2: (b_tile, 256) @ (256, 128)
    h = jnp.dot(h, w2_ref[...], preferred_element_type=jnp.float32)
    h = jnp.maximum(h + b2_ref[...], 0.0).astype(jnp.bfloat16)   # (b_tile, 128)

    # Layer 3: (b_tile, 128) @ (128, 64)
    h = jnp.dot(h, w3_ref[...], preferred_element_type=jnp.float32)
    h = jnp.maximum(h + b3_ref[...], 0.0)                        # (b_tile, 64) f32

    # Layer 4 (out_features = 1): VPU multiply + cross-lane reduce instead of
    # a 1-column MXU push; keep batch on sublanes and store (b_tile, 1).
    e = jnp.sum(h * w4_ref[...], axis=-1, keepdims=True)         # (b_tile, 1)
    o_ref[...] = e + b4_ref[...]


_VMEM_LIMIT = 48 * 1024 * 1024    # scoped VMEM limit: safe on v7x (64 MiB/TC)
_VMEM_BUDGET = 40 * 1024 * 1024   # tile-sizing budget (headroom under the limit)


def _vmem_estimate(b_tile, d):
    """Rough per-grid-step VMEM bytes (double-buffered f32 x tiles, resident
    bf16 weights with their spare buffer, f32 intermediates, output)."""
    x_buf = 2 * b_tile * d * 4
    weights = 2 * 2 * (d * 256 + 256 * 128 + 128 * 64 + 64)
    biases = 2 * 4 * (256 + 128 + 64 + 1)
    acts = b_tile * (256 + 128 + 64 + 1) * 4
    out = 2 * b_tile * 4
    return x_buf + weights + biases + acts + out


def energy_model_forward(x, params, *, block_b=1024):
    """x: (B, input_dim) float32. Returns (B,) float32 energies."""
    B, D = x.shape

    # Batch tile: multiple of 128, large by default to amortize the ~0.35 us
    # per-grid-step overhead and the weight-stationary MXU pushes.
    b_tile = max(128, _round_up(min(block_b, B), 128))
    if B > 128:
        # At least 2 balanced tiles so the parallel batch axis can be split
        # across v7x's two TensorCores.
        b_tile = max(128, min(b_tile, _round_up(pl.cdiv(B, 2), 128)))
    # Shrink the tile if the VMEM estimate would blow the v7x budget
    # (only relevant for very large input_dim).
    while b_tile > 128 and _vmem_estimate(b_tile, D) > _VMEM_BUDGET:
        b_tile = max(128, _round_up(b_tile // 2, 128))

    num_tiles = pl.cdiv(B, b_tile)

    # One-time (tiny) weight casts to bf16; biases / final layer stay f32.
    # All matmuls accumulate in f32 inside the kernel.
    w1 = params["w1"].astype(jnp.bfloat16)                # (D, 256)
    w2 = params["w2"].astype(jnp.bfloat16)                # (256, 128)
    w3 = params["w3"].astype(jnp.bfloat16)                # (128, 64)
    w4 = params["w4"].reshape(1, 64).astype(jnp.float32)  # (1, 64)
    b1 = params["b1"].astype(jnp.float32)
    b2 = params["b2"].astype(jnp.float32)
    b3 = params["b3"].astype(jnp.float32)
    b4 = params["b4"].reshape(1, 1).astype(jnp.float32)

    def const_spec(a):
        # Whole array as one block with a constant index -> DMA'd once and
        # kept VMEM-resident across all grid steps.
        return pl.BlockSpec(a.shape, lambda i: (0,) * a.ndim)

    flops = 2 * B * (D * 256 + 256 * 128 + 128 * 64 + 64)
    bytes_accessed = (B * D * 4 + B * 4
                      + 2 * (D * 256 + 256 * 128 + 128 * 64 + 64)
                      + 4 * (256 + 128 + 64 + 1))

    out = pl.pallas_call(
        _mlp_kernel,
        out_shape=jax.ShapeDtypeStruct((num_tiles * b_tile, 1), jnp.float32),
        grid=(num_tiles,),
        in_specs=[
            # x tiled over the batch; last dim = full D (legal even if
            # D % 128 != 0). The final partial tile's garbage rows are
            # discarded by the out[:B] slice below.
            pl.BlockSpec((b_tile, D), lambda i: (i, 0)),
            const_spec(w1), const_spec(b1),
            const_spec(w2), const_spec(b2),
            const_spec(w3), const_spec(b3),
            const_spec(w4), const_spec(b4),
        ],
        out_specs=pl.BlockSpec((b_tile, 1), lambda i: (i, 0)),
        compiler_params=pltpu.CompilerParams(
            dimension_semantics=("parallel",),
            vmem_limit_bytes=_VMEM_LIMIT,
        ),
        cost_estimate=pl.CostEstimate(
            flops=flops, transcendentals=0, bytes_accessed=bytes_accessed),
    )(x, w1, b1, w2, b2, w3, b3, w4, b4)

    # torch .squeeze(): (B, 1) -> (B,); also drops the padded tail rows.
    return out[:B, 0]


def init_params(key, input_dim):
    """PyTorch Linear default init: U(-1/sqrt(fan_in), +1/sqrt(fan_in)).
    Weights stored transposed vs torch: shape (in_features, out_features)."""
    dims = [(input_dim, 256), (256, 128), (128, 64), (64, 1)]
    params = {}
    for i, (fan_in, fan_out) in enumerate(dims, start=1):
        key, kw, kb = jax.random.split(key, 3)
        bound = 1.0 / jnp.sqrt(float(fan_in))
        params[f"w{i}"] = jax.random.uniform(
            kw, (fan_in, fan_out), jnp.float32, minval=-bound, maxval=bound)
        params[f"b{i}"] = jax.random.uniform(
            kb, (1, fan_out), jnp.float32, minval=-bound, maxval=bound)
    return params


def _reference_forward(x, p):
    """Plain-JAX reference on the same bf16-operand / f32-accumulate path.
    (Results differ from a pure-f32 PyTorch model by O(1e-3) relative.)"""
    h = jnp.dot(x.astype(jnp.bfloat16), p["w1"].astype(jnp.bfloat16),
                preferred_element_type=jnp.float32)
    h = jnp.maximum(h + p["b1"], 0.0).astype(jnp.bfloat16)
    h = jnp.dot(h, p["w2"].astype(jnp.bfloat16),
                preferred_element_type=jnp.float32)
    h = jnp.maximum(h + p["b2"], 0.0).astype(jnp.bfloat16)
    h = jnp.dot(h, p["w3"].astype(jnp.bfloat16),
                preferred_element_type=jnp.float32)
    h = jnp.maximum(h + p["b3"], 0.0)
    return jnp.squeeze(h @ p["w4"] + p["b4"], axis=-1)


if __name__ == "__main__":
    # Synthetic stand-in for silica_positions.npy: (batch, n_atoms, 3) flattened.
    batch = 8
    n_atoms = 32
    input_dim = n_atoms * 3  # 96

    key = jax.random.PRNGKey(0)
    key, kx = jax.random.split(key)
    positions = jax.random.normal(kx, (batch, n_atoms, 3), jnp.float32)
    x = positions.reshape(batch, -1)  # (8, 96)

    params = init_params(jax.random.PRNGKey(0), input_dim)

    energy = jax.block_until_ready(energy_model_forward(x, params))
    ref = jax.block_until_ready(_reference_forward(x, params))
    assert energy.shape == (batch,)
    assert jnp.allclose(energy, ref, atol=1e-3, rtol=1e-3), (
        float(jnp.max(jnp.abs(energy - ref))))

    # Second check: multi-tile grid with a partial last tile (B % b_tile != 0).
    key, kx2 = jax.random.split(key)
    x_big = jax.random.normal(kx2, (300, input_dim), jnp.float32)
    energy_big = jax.block_until_ready(
        energy_model_forward(x_big, params, block_b=256))
    ref_big = jax.block_until_ready(_reference_forward(x_big, params))
    assert energy_big.shape == (300,)
    assert jnp.allclose(energy_big, ref_big, atol=1e-3, rtol=1e-3), (
        float(jnp.max(jnp.abs(energy_big - ref_big))))

    print("KERNEL_OK")
</pallas_src>

<mosaic_0001>
module attributes {stable_mosaic.version = 11 : i64} {
  func.func @_mlp_kernel(%arg0: i32, %arg1: memref<128x96xf32, #tpu.memory_space<vmem>>, %arg2: memref<96x256xbf16, #tpu.memory_space<vmem>>, %arg3: memref<1x256xf32, #tpu.memory_space<vmem>>, %arg4: memref<256x128xbf16, #tpu.memory_space<vmem>>, %arg5: memref<1x128xf32, #tpu.memory_space<vmem>>, %arg6: memref<128x64xbf16, #tpu.memory_space<vmem>>, %arg7: memref<1x64xf32, #tpu.memory_space<vmem>>, %arg8: memref<1x64xf32, #tpu.memory_space<vmem>>, %arg9: memref<1x1xf32, #tpu.memory_space<vmem>>, %arg10: memref<128x1xf32, #tpu.memory_space<vmem>>) attributes {dimension_semantics = [#tpu.dimension_semantics<parallel>], iteration_bounds = array<i64: 1>, scalar_prefetch = 0 : i64, scratch_operands = 0 : i64, tpu.core_type = #tpu.core_type<tc>, window_params = [{transform_indices = @transform_0, window_bounds = array<i64: 128, 96>}, {pipeline_mode = #tpu.pipeline_mode<synchronous>, transform_indices = @transform_1, window_bounds = array<i64: 96, 256>}, {pipeline_mode = #tpu.pipeline_mode<synchronous>, transform_indices = @transform_2, window_bounds = array<i64: 1, 256>}, {pipeline_mode = #tpu.pipeline_mode<synchronous>, transform_indices = @transform_3, window_bounds = array<i64: 256, 128>}, {pipeline_mode = #tpu.pipeline_mode<synchronous>, transform_indices = @transform_4, window_bounds = array<i64: 1, 128>}, {pipeline_mode = #tpu.pipeline_mode<synchronous>, transform_indices = @transform_5, window_bounds = array<i64: 128, 64>}, {pipeline_mode = #tpu.pipeline_mode<synchronous>, transform_indices = @transform_6, window_bounds = array<i64: 1, 64>}, {pipeline_mode = #tpu.pipeline_mode<synchronous>, transform_indices = @transform_7, window_bounds = array<i64: 1, 64>}, {pipeline_mode = #tpu.pipeline_mode<synchronous>, transform_indices = @transform_8, window_bounds = array<i64: 1, 1>}, {transform_indices = @transform_9, window_bounds = array<i64: 128, 1>}]} {
    %c0 = arith.constant 0 : index
    %c0_0 = arith.constant 0 : index
    %0 = vector.load %arg1[%c0, %c0_0] : memref<128x96xf32, #tpu.memory_space<vmem>>, vector<128x96xf32>
    %1 = arith.truncf %0 : vector<128x96xf32> to vector<128x96xbf16>
    %c0_1 = arith.constant 0 : index
    %c0_2 = arith.constant 0 : index
    %2 = vector.load %arg2[%c0_1, %c0_2] : memref<96x256xbf16, #tpu.memory_space<vmem>>, vector<96x256xbf16>
    %cst = arith.constant dense<0.000000e+00> : vector<128x256xf32>
    %3 = tpu.matmul %1, %2, %cst {dimension_numbers = #tpu.dot_dimension_numbers<[1], [0], [0], [1], [0, 0, 1, 1], [], []>} : vector<128x96xbf16>, vector<96x256xbf16>, vector<128x256xf32> -> vector<128x256xf32>
    %c0_3 = arith.constant 0 : index
    %c0_4 = arith.constant 0 : index
    %4 = vector.load %arg3[%c0_3, %c0_4] : memref<1x256xf32, #tpu.memory_space<vmem>>, vector<1x256xf32>
    %5 = vector.broadcast %4 : vector<1x256xf32> to vector<128x256xf32>
    %6 = arith.addf %3, %5 : vector<128x256xf32>
    %cst_5 = arith.constant 0.000000e+00 : f32
    %7 = vector.broadcast %cst_5 : f32 to vector<128x256xf32>
    %8 = arith.maximumf %6, %7 : vector<128x256xf32>
    %9 = arith.truncf %8 : vector<128x256xf32> to vector<128x256xbf16>
    %c0_6 = arith.constant 0 : index
    %c0_7 = arith.constant 0 : index
    %10 = vector.load %arg4[%c0_6, %c0_7] : memref<256x128xbf16, #tpu.memory_space<vmem>>, vector<256x128xbf16>
    %cst_8 = arith.constant dense<0.000000e+00> : vector<128x128xf32>
    %11 = tpu.matmul %9, %10, %cst_8 {dimension_numbers = #tpu.dot_dimension_numbers<[1], [0], [0], [1], [0, 0, 1, 1], [], []>} : vector<128x256xbf16>, vector<256x128xbf16>, vector<128x128xf32> -> vector<128x128xf32>
    %c0_9 = arith.constant 0 : index
    %c0_10 = arith.constant 0 : index
    %12 = vector.load %arg5[%c0_9, %c0_10] : memref<1x128xf32, #tpu.memory_space<vmem>>, vector<1x128xf32>
    %13 = vector.broadcast %12 : vector<1x128xf32> to vector<128x128xf32>
    %14 = arith.addf %11, %13 : vector<128x128xf32>
    %cst_11 = arith.constant 0.000000e+00 : f32
    %15 = vector.broadcast %cst_11 : f32 to vector<128x128xf32>
    %16 = arith.maximumf %14, %15 : vector<128x128xf32>
    %17 = arith.truncf %16 : vector<128x128xf32> to vector<128x128xbf16>
    %c0_12 = arith.constant 0 : index
    %c0_13 = arith.constant 0 : index
    %18 = vector.load %arg6[%c0_12, %c0_13] : memref<128x64xbf16, #tpu.memory_space<vmem>>, vector<128x64xbf16>
    %cst_14 = arith.constant dense<0.000000e+00> : vector<128x64xf32>
    %19 = tpu.matmul %17, %18, %cst_14 {dimension_numbers = #tpu.dot_dimension_numbers<[1], [0], [0], [1], [0, 0, 1, 1], [], []>} : vector<128x128xbf16>, vector<128x64xbf16>, vector<128x64xf32> -> vector<128x64xf32>
    %c0_15 = arith.constant 0 : index
    %c0_16 = arith.constant 0 : index
    %20 = vector.load %arg7[%c0_15, %c0_16] : memref<1x64xf32, #tpu.memory_space<vmem>>, vector<1x64xf32>
    %21 = vector.broadcast %20 : vector<1x64xf32> to vector<128x64xf32>
    %22 = arith.addf %19, %21 : vector<128x64xf32>
    %cst_17 = arith.constant 0.000000e+00 : f32
    %23 = vector.broadcast %cst_17 : f32 to vector<128x64xf32>
    %24 = arith.maximumf %22, %23 : vector<128x64xf32>
    %c0_18 = arith.constant 0 : index
    %c0_19 = arith.constant 0 : index
    %25 = vector.load %arg8[%c0_18, %c0_19] : memref<1x64xf32, #tpu.memory_space<vmem>>, vector<1x64xf32>
    %26 = vector.broadcast %25 : vector<1x64xf32> to vector<128x64xf32>
    %27 = arith.mulf %24, %26 : vector<128x64xf32>
    %cst_20 = arith.constant dense<0.000000e+00> : vector<128xf32>
    %28 = vector.multi_reduction <add>, %27, %cst_20 [1] : vector<128x64xf32> to vector<128xf32>
    %29 = vector.shape_cast %28 : vector<128xf32> to vector<128x1xf32>
    %c0_21 = arith.constant 0 : index
    %c0_22 = arith.constant 0 : index
    %30 = vector.load %arg9[%c0_21, %c0_22] : memref<1x1xf32, #tpu.memory_space<vmem>>, vector<1x1xf32>
    %31 = vector.broadcast %30 : vector<1x1xf32> to vector<128x1xf32>
    %32 = arith.addf %29, %31 : vector<128x1xf32>
    %c0_23 = arith.constant 0 : index
    %c0_24 = arith.constant 0 : index
    %33 = vector.load %arg10[%c0_23, %c0_24] : memref<128x1xf32, #tpu.memory_space<vmem>>, vector<128x1xf32>
    tpu.vector_store %arg10[%c0_23, %c0_24], %32 {strides = array<i32>} : memref<128x1xf32, #tpu.memory_space<vmem>>, vector<128x1xf32>,
    return
  }
  func.func @transform_0(%arg0: i32) -> (i32, i32) {
    %c0_i32 = arith.constant 0 : i32
    %c0_i32_0 = arith.constant 0 : i32
    return %arg0, %c0_i32 : i32, i32
  }
  func.func @transform_1(%arg0: i32) -> (i32, i32) {
    %c0_i32 = arith.constant 0 : i32
    %c0_i32_0 = arith.constant 0 : i32
    %c0_i32_1 = arith.constant 0 : i32
    return %c0_i32, %c0_i32_0 : i32, i32
  }
  func.func @transform_2(%arg0: i32) -> (i32, i32) {
    %c0_i32 = arith.constant 0 : i32
    %c0_i32_0 = arith.constant 0 : i32
    %c0_i32_1 = arith.constant 0 : i32
    return %c0_i32, %c0_i32_0 : i32, i32
  }
  func.func @transform_3(%arg0: i32) -> (i32, i32) {
    %c0_i32 = arith.constant 0 : i32
    %c0_i32_0 = arith.constant 0 : i32
    %c0_i32_1 = arith.constant 0 : i32
    return %c0_i32, %c0_i32_0 : i32, i32
  }
  func.func @transform_4(%arg0: i32) -> (i32, i32) {
    %c0_i32 = arith.constant 0 : i32
    %c0_i32_0 = arith.constant 0 : i32
    %c0_i32_1 = arith.constant 0 : i32
    return %c0_i32, %c0_i32_0 : i32, i32
  }
  func.func @transform_5(%arg0: i32) -> (i32, i32) {
    %c0_i32 = arith.constant 0 : i32
    %c0_i32_0 = arith.constant 0 : i32
    %c0_i32_1 = arith.constant 0 : i32
    return %c0_i32, %c0_i32_0 : i32, i32
  }
  func.func @transform_6(%arg0: i32) -> (i32, i32) {
    %c0_i32 = arith.constant 0 : i32
    %c0_i32_0 = arith.constant 0 : i32
    %c0_i32_1 = arith.constant 0 : i32
    return %c0_i32, %c0_i32_0 : i32, i32
  }
  func.func @transform_7(%arg0: i32) -> (i32, i32) {
    %c0_i32 = arith.constant 0 : i32
    %c0_i32_0 = arith.constant 0 : i32
    %c0_i32_1 = arith.constant 0 : i32
    return %c0_i32, %c0_i32_0 : i32, i32
  }
  func.func @transform_8(%arg0: i32) -> (i32, i32) {
    %c0_i32 = arith.constant 0 : i32
    %c0_i32_0 = arith.constant 0 : i32
    %c0_i32_1 = arith.constant 0 : i32
    return %c0_i32, %c0_i32_0 : i32, i32
  }
  func.func @transform_9(%arg0: i32) -> (i32, i32) {
    %c0_i32 = arith.constant 0 : i32
    %c0_i32_0 = arith.constant 0 : i32
    return %arg0, %c0_i32 : i32, i32
  }
}

</mosaic_0001>

<llo_original>
// kernel: tpu_custom_call.1
$region0: #{tpu_custom_call.1}
  #allocation0 [shape = 'u32[]', space=smem, size = 0x4, offset = 0x4, fixed_abs, tag = 'smem constant byte address 0x4 - core index']
  #allocation1 [shape = 'u32[144,128]{1,0:T(1,128)}', space=vmem, size = 0x12000, scoped, tag = 'internal scratch']
  #allocation2 [shape = 'f32[1,1]{1,0:T(1,128)S(1)}', space=vmem, size = 0x200, scoped, tag = 'scoped memory for tpu_custom_call.1']
  %s0 = inlined_call_operand.hbm [shape: f32[8,96], index: 0, kind: input, shape index: {}]
  %s1 = inlined_call_operand.vmem [shape: bf16[96,256], index: 1, kind: input, shape index: {}]
  %s2 = inlined_call_operand.vmem [shape: f32[1,256], index: 2, kind: input, shape index: {}]
  %s3 = inlined_call_operand.hbm [shape: bf16[256,128], index: 3, kind: input, shape index: {}]
  %s4 = inlined_call_operand.vmem [shape: f32[1,128], index: 4, kind: input, shape index: {}]
  %s5 = inlined_call_operand.vmem [shape: bf16[128,64], index: 5, kind: input, shape index: {}]
  %s6 = inlined_call_operand.vmem [shape: f32[1,64], index: 6, kind: input, shape index: {}]
  %s7 = inlined_call_operand.vmem [shape: f32[1,64], index: 7, kind: input, shape index: {}]
  %s8 = inlined_call_operand.<no memory space> [shape: f32[1,1], index: 8, kind: input, shape index: {}]
  %s9 = inlined_call_operand.vmem [shape: f32[128,1], index: 9, kind: output, shape index: {}]
  %s10 = sld [smem:[#allocation0]]
  $region54: #{tpu_custom_call.1} parent=0
    _
  %s12 = ssub.s32 1, %s10
  %s13 = scalar_select 0, %s12, %s10
  %v14 = vstv %s8
  %15 = vst [vmem:[#allocation2] sm:$0x1] %v14
  $region1: #{tpu_custom_call.1} parent=0
    #allocation3 [shape = 'u8[65536]{0}', space=vmem, size = 0x10000, scoped, tag = 'input window, operand 0, single buffered']
    #allocation4 [shape = 's32[1]{0}', space=sflag, size = 0x4, scoped, tag = 'scoped memory for tpu_custom_call.1']
    #allocation5 [shape = 'u8[65536]{0}', space=vmem, size = 0x10000, scoped, tag = 'input window, operand 3, single buffered']
    #allocation6 [shape = 's32[1]{0}', space=sflag, size = 0x4, scoped, tag = 'scoped memory for tpu_custom_call.1']
    %16 = vsyncpa [#allocation4], 0
    %17 = vsyncpa [#allocation6], 0
    // Predicated region
    $region2: #{tpu_custom_call.1} parent=1 // pred_check
      _
    $region3: #{tpu_custom_call.1} parent=1 // pred_check_branch
      %19 = sbr.rel (0) target = $region5
    $region4: #{tpu_custom_call.1} parent=1 // pred_region
      %s21 = ssub.s32 2048, 128
      %22 = vsyncadd [#allocation4], %s21
      %s23 = sshll.u32 [#allocation3], 4
      %s24 = int_to_ptr.vmem [resolvable:$true] %s23
      %29 = dma.hbm_to_vmem [thread:$0]  %s0, 128, %s24, [#allocation4], 128, 128, 8
    $region5: #{tpu_custom_call.1} parent=1 // pred_fallthru
      _
    // Predicated region
    $region6: #{tpu_custom_call.1} parent=1 // pred_check
      _
    $region7: #{tpu_custom_call.1} parent=1 // pred_check_branch
      %31 = sbr.rel (0) target = $region9
    $region8: #{tpu_custom_call.1} parent=1 // pred_region
      _
    $region9: #{tpu_custom_call.1} parent=1 // pred_fallthru
      _
    // Predicated region
    $region10: #{tpu_custom_call.1} parent=1 // pred_check
      _
    $region11: #{tpu_custom_call.1} parent=1 // pred_check_branch
      %33 = sbr.rel (0) target = $region13
    $region12: #{tpu_custom_call.1} parent=1 // pred_region
      _
    $region13: #{tpu_custom_call.1} parent=1 // pred_fallthru
      _
    // Predicated region
    $region14: #{tpu_custom_call.1} parent=1 // pred_check
      _
    $region15: #{tpu_custom_call.1} parent=1 // pred_check_branch
      %35 = sbr.rel (0) target = $region17
    $region16: #{tpu_custom_call.1} parent=1 // pred_region
      %s37 = ssub.s32 2048, 2048
      %38 = vsyncadd [#allocation6], %s37
      %s39 = sshll.u32 [#allocation5], 4
      %s40 = int_to_ptr.vmem [resolvable:$true] %s39
      %45 = dma.hbm_to_vmem [thread:$0]  %s3, 2048, %s40, [#allocation6], 64, 64, 4
    $region17: #{tpu_custom_call.1} parent=1 // pred_fallthru
      _
    // Predicated region
    $region18: #{tpu_custom_call.1} parent=1 // pred_check
      _
    $region19: #{tpu_custom_call.1} parent=1 // pred_check_branch
      %47 = sbr.rel (0) target = $region21
    $region20: #{tpu_custom_call.1} parent=1 // pred_region
      _
    $region21: #{tpu_custom_call.1} parent=1 // pred_fallthru
      _
    // Predicated region
    $region22: #{tpu_custom_call.1} parent=1 // pred_check
      _
    $region23: #{tpu_custom_call.1} parent=1 // pred_check_branch
      %49 = sbr.rel (0) target = $region25
    $region24: #{tpu_custom_call.1} parent=1 // pred_region
      _
    $region25: #{tpu_custom_call.1} parent=1 // pred_fallthru
      _
    // Predicated region
    $region26: #{tpu_custom_call.1} parent=1 // pred_check
      _
    $region27: #{tpu_custom_call.1} parent=1 // pred_check_branch
      %51 = sbr.rel (0) target = $region29
    $region28: #{tpu_custom_call.1} parent=1 // pred_region
      _
    $region29: #{tpu_custom_call.1} parent=1 // pred_fallthru
      _
    // Predicated region
    $region30: #{tpu_custom_call.1} parent=1 // pred_check
      _
    $region31: #{tpu_custom_call.1} parent=1 // pred_check_branch
      %53 = sbr.rel (0) target = $region33
    $region32: #{tpu_custom_call.1} parent=1 // pred_region
      _
    $region33: #{tpu_custom_call.1} parent=1 // pred_fallthru
      _
    // Predicated region
    $region34: #{tpu_custom_call.1} parent=1 // pred_check
      _
    $region35: #{tpu_custom_call.1} parent=1 // pred_check_branch
      %55 = sbr.rel (0) target = $region37
    $region36: #{tpu_custom_call.1} parent=1 // pred_region
      _
    $region37: #{tpu_custom_call.1} parent=1 // pred_fallthru
      _
    // Predicated region
    $region38: #{tpu_custom_call.1} parent=1 // pred_check
      _
    $region39: #{tpu_custom_call.1} parent=1 // pred_check_branch
      %57 = sbr.rel (0) target = $region41
    $region40: #{tpu_custom_call.1} parent=1 // pred_region
      %58 = dma.done [#allocation4], 2048
    $region41: #{tpu_custom_call.1} parent=1 // pred_fallthru
      _
    // Predicated region
    $region42: #{tpu_custom_call.1} parent=1 // pred_check
      _
    $region43: #{tpu_custom_call.1} parent=1 // pred_check_branch
      %60 = sbr.rel (0) target = $region45
    $region44: #{tpu_custom_call.1} parent=1 // pred_region
      %61 = dma.done [#allocation6], 2048
    $region45: #{tpu_custom_call.1} parent=1 // pred_fallthru
      _
    %v63 = vld [vmem:[#allocation3] sm:$0xff]
    %v64 = vld [vmem:[#allocation3 + $0x8] sm:$0xff]
    %v65 = vld [vmem:[#allocation3 + $0x10] sm:$0xff]
    %v66 = vld [vmem:[#allocation3 + $0x18] sm:$0xff]
    %v67 = vld [vmem:[#allocation3 + $0x20] sm:$0xff]
    %v68 = vld [vmem:[#allocation3 + $0x28] sm:$0xff]
    %v69 = vld [vmem:[#allocation3 + $0x30] sm:$0xff]
    %v70 = vld [vmem:[#allocation3 + $0x38] sm:$0xff]
    %v71 = vld [vmem:[#allocation3 + $0x40] sm:$0xff]
    %v72 = vld [vmem:[#allocation3 + $0x48] sm:$0xff]
    %v73 = vld [vmem:[#allocation3 + $0x50] sm:$0xff]
    %v74 = vld [vmem:[#allocation3 + $0x58] sm:$0xff]
    %v75 = vld [vmem:[#allocation3 + $0x60] sm:$0xff]
    %v76 = vld [vmem:[#allocation3 + $0x68] sm:$0xff]
    %v77 = vld [vmem:[#allocation3 + $0x70] sm:$0xff]
    %v78 = vld [vmem:[#allocation3 + $0x78] sm:$0xff]
    %v79 = vpack.c.bf16 %v64, %v63
    %v80 = vpack.c.bf16 %v66, %v65
    %v81 = vpack.c.bf16 %v68, %v67
    %v82 = vpack.c.bf16 %v70, %v69
    %v83 = vpack.c.bf16 %v72, %v71
    %v84 = vpack.c.bf16 %v74, %v73
    %v85 = vpack.c.bf16 %v76, %v75
    %v86 = vpack.c.bf16 %v78, %v77
    %v87 = vld [vmem:[%s1] sm:$0xff]
    %v88 = vld [vmem:[%s1 + $0x8] sm:$0xff]
    %v89 = vld [vmem:[%s1 + $0x10] sm:$0xff]
    %v90 = vld [vmem:[%s1 + $0x18] sm:$0xff]
    %v91 = vld [vmem:[%s1 + $0x20] sm:$0xff]
    %v92 = vld [vmem:[%s1 + $0x28] sm:$0xff]
    %v93 = vld [vmem:[%s1 + $0x30] sm:$0xff]
    %v94 = vld [vmem:[%s1 + $0x38] sm:$0xff]
    %v95 = vld [vmem:[%s1 + $0x40] sm:$0xff]
    %v96 = vld [vmem:[%s1 + $0x48] sm:$0xff]
    %v97 = vld [vmem:[%s1 + $0x50] sm:$0xff]
    %v98 = vld [vmem:[%s1 + $0x58] sm:$0xff]
    %v99 = vld [vmem:[%s2] sm:$0x3]
    %v101 = vlaneseq
    %v102 = vshrl.u32 %v101, 7
    %v103 = vsub.s32 0, %v102
    %v104 = vrot.slane %v99, %v103
    %v105 = vlaneseq
    %v106 = vshrl.u32 %v105, 7
    %v107 = vsub.s32 1, %v106
    %v108 = vrot.slane %v99, %v107
    %v123 = vunpack.c.l.b16 %v87
    %v124 = vunpack.c.h.b16 %v87
    %v125 = vunpack.c.l.b16 %v88
    %v126 = vunpack.c.h.b16 %v88
    %v127 = vunpack.c.l.b16 %v89
    %v128 = vunpack.c.h.b16 %v89
    %v129 = vunpack.c.l.b16 %v90
    %v130 = vunpack.c.h.b16 %v90
    %v131 = vunpack.c.l.b16 %v91
    %v132 = vunpack.c.h.b16 %v91
    %v133 = vunpack.c.l.b16 %v92
    %v134 = vunpack.c.h.b16 %v92
    %v135 = vunpack.c.l.b16 %v93
    %v136 = vunpack.c.h.b16 %v93
    %v137 = vunpack.c.l.b16 %v94
    %v138 = vunpack.c.h.b16 %v94
    %v139 = vunpack.c.l.b16 %v95
    %v140 = vunpack.c.h.b16 %v95
    %v141 = vunpack.c.l.b16 %v96
    %v142 = vunpack.c.h.b16 %v96
    %v143 = vunpack.c.l.b16 %v97
    %v144 = vunpack.c.h.b16 %v97
    %v145 = vunpack.c.l.b16 %v98
    %v146 = vunpack.c.h.b16 %v98
    %v147 = vpack.c.b16 %v125, %v123
    %v148 = vpack.c.b16 %v126, %v124
    %v149 = vpack.c.b16 %v129, %v127
    %v150 = vpack.c.b16 %v130, %v128
    %v151 = vpack.c.b16 %v133, %v131
    %v152 = vpack.c.b16 %v134, %v132
    %v153 = vpack.c.b16 %v137, %v135
    %v154 = vpack.c.b16 %v138, %v136
    %v155 = vpack.c.b16 %v141, %v139
    %v156 = vpack.c.b16 %v142, %v140
    %v157 = vpack.c.b16 %v145, %v143
    %v158 = vpack.c.b16 %v146, %v144
    %vm171 = vcmask 785408
    %v173 = vsel %vm171, %v79, 0
    %v176 = vsel %vm171, %v80, 0
    %v179 = vsel %vm171, %v81, 0
    %v182 = vsel %vm171, %v82, 0
    %v185 = vsel %vm171, %v83, 0
    %v188 = vsel %vm171, %v84, 0
    %v191 = vsel %vm171, %v85, 0
    %v194 = vsel %vm171, %v86, 0
    %196 = vmatprep.subr.bf16.mxu0 0
    %197 = vmatpush1.bf16.msra.mxu0 0
    %198 = vmatprep.subr.bf16.mxu0 0
    %199 = vmatpush1.bf16.msra.mxu0 0
    %200 = vmatprep.subr.bf16.mxu0 %v158
    %201 = vmatpush1.bf16.msra.mxu0 %v157
    %202 = vmatprep.subr.bf16.mxu0 %v156
    %203 = vmatpush1.bf16.msra.mxu0 %v155
    %204 = vmatprep.subr.bf16.mxu0 %v154
    %205 = vmatpush1.bf16.msra.mxu0 %v153
    %206 = vmatprep.subr.bf16.mxu0 %v152
    %207 = vmatpush1.bf16.msra.mxu0 %v151
    %208 = vmatprep.subr.bf16.mxu0 %v150
    %209 = vmatpush1.bf16.msra.mxu0 %v149
    %210 = vmatprep.subr.bf16.mxu0 %v148
    %211 = vmatpush1.bf16.msra.mxu0 %v147
    %212 = vmatprep.subr.bf16.mxu0 0
    %213 = vmatpush2.bf16.msra.mxu0 0
    %214 = vmatprep.subr.bf16.mxu0 0
    %215 = vmatpush2.bf16.msra.mxu0 0
    %216 = vmatprep.subr.bf16.mxu0 0
    %217 = vmatpush2.bf16.msra.mxu0 0
    %218 = vmatprep.subr.bf16.mxu0 0
    %219 = vmatpush2.bf16.msra.mxu0 0
    %220 = vmatprep.subr.bf16.mxu0 0
    %221 = vmatpush2.bf16.msra.mxu0 0
    %222 = vmatprep.subr.bf16.mxu0 0
    %223 = vmatpush2.bf16.msra.mxu0 0
    %224 = vmatprep.subr.bf16.mxu0 0
    %225 = vmatpush2.bf16.msra.mxu0 0
    %226 = vmatprep.subr.bf16.mxu0 0
    %227 = vmatpush2.bf16.msra.mxu0 0
    %228 = vmatprep.mubr.bf16.mxu0 0
    %229 = vmatmul.mubr.bf16.gmra.mxu0 %v173
    %v230 = vpop.f32.mrf.mxu0
    %v231 = vadd.f32 %v104, %v230
    %v232 = vpop.f32.mrf.mxu0
    %v233 = vadd.f32 %v108, %v232
    %v234 = vpop.f32.mrf.mxu0
    %v235 = vadd.f32 %v104, %v234
    %v236 = vpop.f32.mrf.mxu0
    %v237 = vadd.f32 %v108, %v236
    %238 = vmatprep.mubr.bf16.mxu0 0
    %239 = vmatmul.mubr.bf16.gmra.mxu0 %v176
    %v240 = vpop.f32.mrf.mxu0
    %v241 = vadd.f32 %v104, %v240
    %v242 = vpop.f32.mrf.mxu0
    %v243 = vadd.f32 %v108, %v242
    %v244 = vpop.f32.mrf.mxu0
    %v245 = vadd.f32 %v104, %v244
    %v246 = vpop.f32.mrf.mxu0
    %v247 = vadd.f32 %v108, %v246
    %248 = vmatprep.mubr.bf16.mxu0 0
    %249 = vmatmul.mubr.bf16.gmra.mxu0 %v179
    %v250 = vpop.f32.mrf.mxu0
    %v251 = vadd.f32 %v104, %v250
    %v252 = vpop.f32.mrf.mxu0
    %v253 = vadd.f32 %v108, %v252
    %v254 = vpop.f32.mrf.mxu0
    %v255 = vadd.f32 %v104, %v254
    %v256 = vpop.f32.mrf.mxu0
    %v257 = vadd.f32 %v108, %v256
    %258 = vmatprep.mubr.bf16.mxu0 0
    %259 = vmatmul.mubr.bf16.gmra.mxu0 %v182
    %v260 = vpop.f32.mrf.mxu0
    %v261 = vadd.f32 %v104, %v260
    %v262 = vpop.f32.mrf.mxu0
    %v263 = vadd.f32 %v108, %v262
    %v264 = vpop.f32.mrf.mxu0
    %v265 = vadd.f32 %v104, %v264
    %v266 = vpop.f32.mrf.mxu0
    %v267 = vadd.f32 %v108, %v266
    %268 = vmatprep.mubr.bf16.mxu0 0
    %269 = vmatmul.mubr.bf16.gmra.mxu0 %v185
    %v270 = vpop.f32.mrf.mxu0
    %v271 = vadd.f32 %v104, %v270
    %v272 = vpop.f32.mrf.mxu0
    %v273 = vadd.f32 %v108, %v272
    %v274 = vpop.f32.mrf.mxu0
    %v275 = vadd.f32 %v104, %v274
    %v276 = vpop.f32.mrf.mxu0
    %v277 = vadd.f32 %v108, %v276
    %278 = vmatprep.mubr.bf16.mxu0 0
    %279 = vmatmul.mubr.bf16.gmra.mxu0 %v188
    %v280 = vpop.f32.mrf.mxu0
    %v281 = vadd.f32 %v104, %v280
    %v282 = vpop.f32.mrf.mxu0
    %v283 = vadd.f32 %v108, %v282
    %v284 = vpop.f32.mrf.mxu0
    %v285 = vadd.f32 %v104, %v284
    %v286 = vpop.f32.mrf.mxu0
    %v287 = vadd.f32 %v108, %v286
    %288 = vmatprep.mubr.bf16.mxu0 0
    %289 = vmatmul.mubr.bf16.gmra.mxu0 %v191
    %v290 = vpop.f32.mrf.mxu0
    %v291 = vadd.f32 %v104, %v290
    %v292 = vpop.f32.mrf.mxu0
    %v293 = vadd.f32 %v108, %v292
    %v294 = vpop.f32.mrf.mxu0
    %v295 = vadd.f32 %v104, %v294
    %v296 = vpop.f32.mrf.mxu0
    %v297 = vadd.f32 %v108, %v296
    %298 = vmatprep.mubr.bf16.mxu0 0
    %299 = vmatmul.mubr.bf16.gmra.mxu0 %v194
    %v300 = vpop.f32.mrf.mxu0
    %v301 = vadd.f32 %v104, %v300
    %v302 = vpop.f32.mrf.mxu0
    %v303 = vadd.f32 %v108, %v302
    %v304 = vpop.f32.mrf.mxu0
    %v305 = vadd.f32 %v104, %v304
    %v306 = vpop.f32.mrf.mxu0
    %v307 = vadd.f32 %v108, %v306
    %308 = vdwg.mxu0
    %v309 = vmax.f32 %v231, 0.0
    %v310 = vmax.f32 %v233, 0.0
    %v311 = vmax.f32 %v235, 0.0
    %v312 = vmax.f32 %v237, 0.0
    %v313 = vmax.f32 %v241, 0.0
    %v314 = vmax.f32 %v243, 0.0
    %v315 = vmax.f32 %v245, 0.0
    %v316 = vmax.f32 %v247, 0.0
    %v317 = vmax.f32 %v251, 0.0
    %v318 = vmax.f32 %v253, 0.0
    %v319 = vmax.f32 %v255, 0.0
    %v320 = vmax.f32 %v257, 0.0
    %v321 = vmax.f32 %v261, 0.0
    %v322 = vmax.f32 %v263, 0.0
    %v323 = vmax.f32 %v265, 0.0
    %v324 = vmax.f32 %v267, 0.0
    %v325 = vmax.f32 %v271, 0.0
    %v326 = vmax.f32 %v273, 0.0
    %v327 = vmax.f32 %v275, 0.0
    %v328 = vmax.f32 %v277, 0.0
    %v329 = vmax.f32 %v281, 0.0
    %v330 = vmax.f32 %v283, 0.0
    %v331 = vmax.f32 %v285, 0.0
    %v332 = vmax.f32 %v287, 0.0
    %v333 = vmax.f32 %v291, 0.0
    %v334 = vmax.f32 %v293, 0.0
    %v335 = vmax.f32 %v295, 0.0
    %v336 = vmax.f32 %v297, 0.0
    %v337 = vmax.f32 %v301, 0.0
    %v338 = vmax.f32 %v303, 0.0
    %v339 = vmax.f32 %v305, 0.0
    %v340 = vmax.f32 %v307, 0.0
    %v341 = vpack.c.bf16 %v311, %v309
    %v342 = vpack.c.bf16 %v312, %v310
    %v343 = vpack.c.bf16 %v315, %v313
    %v344 = vpack.c.bf16 %v316, %v314
    %v345 = vpack.c.bf16 %v319, %v317
    %v346 = vpack.c.bf16 %v320, %v318
    %v347 = vpack.c.bf16 %v323, %v321
    %v348 = vpack.c.bf16 %v324, %v322
    %v349 = vpack.c.bf16 %v327, %v325
    %v350 = vpack.c.bf16 %v328, %v326
    %v351 = vpack.c.bf16 %v331, %v329
    %v352 = vpack.c.bf16 %v332, %v330
    %v353 = vpack.c.bf16 %v335, %v333
    %v354 = vpack.c.bf16 %v336, %v334
    %v355 = vpack.c.bf16 %v339, %v337
    %v356 = vpack.c.bf16 %v340, %v338
    %v357 = vld [vmem:[#allocation5] sm:$0xf]
    %v358 = vld [vmem:[#allocation5 + $0x4] sm:$0xf]
    %v359 = vld [vmem:[#allocation5 + $0x8] sm:$0xf]
    %v360 = vld [vmem:[#allocation5 + $0xc] sm:$0xf]
    %v361 = vld [vmem:[#allocation5 + $0x10] sm:$0xf]
    %v362 = vld [vmem:[#allocation5 + $0x14] sm:$0xf]
    %v363 = vld [vmem:[#allocation5 + $0x18] sm:$0xf]
    %v364 = vld [vmem:[#allocation5 + $0x1c] sm:$0xf]
    %v365 = vld [vmem:[#allocation5 + $0x20] sm:$0xf]
    %v366 = vld [vmem:[#allocation5 + $0x24] sm:$0xf]
    %v367 = vld [vmem:[#allocation5 + $0x28] sm:$0xf]
    %v368 = vld [vmem:[#allocation5 + $0x2c] sm:$0xf]
    %v369 = vld [vmem:[#allocation5 + $0x30] sm:$0xf]
    %v370 = vld [vmem:[#allocation5 + $0x34] sm:$0xf]
    %v371 = vld [vmem:[#allocation5 + $0x38] sm:$0xf]
    %v372 = vld [vmem:[#allocation5 + $0x3c] sm:$0xf]
    %v373 = vld [vmem:[#allocation5 + $0x40] sm:$0xf]
    %v374 = vld [vmem:[#allocation5 + $0x44] sm:$0xf]
    %v375 = vld [vmem:[#allocation5 + $0x48] sm:$0xf]
    %v376 = vld [vmem:[#allocation5 + $0x4c] sm:$0xf]
    %v377 = vld [vmem:[#allocation5 + $0x50] sm:$0xf]
    %v378 = vld [vmem:[#allocation5 + $0x54] sm:$0xf]
    %v379 = vld [vmem:[#allocation5 + $0x58] sm:$0xf]
    %v380 = vld [vmem:[#allocation5 + $0x5c] sm:$0xf]
    %v381 = vld [vmem:[#allocation5 + $0x60] sm:$0xf]
    %v382 = vld [vmem:[#allocation5 + $0x64] sm:$0xf]
    %v383 = vld [vmem:[#allocation5 + $0x68] sm:$0xf]
    %v384 = vld [vmem:[#allocation5 + $0x6c] sm:$0xf]
    %v385 = vld [vmem:[#allocation5 + $0x70] sm:$0xf]
    %v386 = vld [vmem:[#allocation5 + $0x74] sm:$0xf]
    %v387 = vld [vmem:[#allocation5 + $0x78] sm:$0xf]
    %v388 = vld [vmem:[#allocation5 + $0x7c] sm:$0xf]
    %v389 = vld [vmem:[%s4] sm:$0x1]
    %v391 = vlaneseq
    %v392 = vshrl.u32 %v391, 7
    %v393 = vsub.s32 0, %v392
    %v394 = vrot.slane %v389, %v393
    %v428 = vunpack.c.l.b16 %v357
    %v429 = vunpack.c.l.b16 %v358
    %v430 = vunpack.c.l.b16 %v359
    %v431 = vunpack.c.l.b16 %v360
    %v432 = vunpack.c.l.b16 %v361
    %v433 = vunpack.c.l.b16 %v362
    %v434 = vunpack.c.l.b16 %v363
    %v435 = vunpack.c.l.b16 %v364
    %v436 = vunpack.c.l.b16 %v365
    %v437 = vunpack.c.l.b16 %v366
    %v438 = vunpack.c.l.b16 %v367
    %v439 = vunpack.c.l.b16 %v368
    %v440 = vunpack.c.l.b16 %v369
    %v441 = vunpack.c.l.b16 %v370
    %v442 = vunpack.c.l.b16 %v371
    %v443 = vunpack.c.l.b16 %v372
    %v444 = vunpack.c.l.b16 %v373
    %v445 = vunpack.c.l.b16 %v374
    %v446 = vunpack.c.l.b16 %v375
    %v447 = vunpack.c.l.b16 %v376
    %v448 = vunpack.c.l.b16 %v377
    %v449 = vunpack.c.l.b16 %v378
    %v450 = vunpack.c.l.b16 %v379
    %v451 = vunpack.c.l.b16 %v380
    %v452 = vunpack.c.l.b16 %v381
    %v453 = vunpack.c.l.b16 %v382
    %v454 = vunpack.c.l.b16 %v383
    %v455 = vunpack.c.l.b16 %v384
    %v456 = vunpack.c.l.b16 %v385
    %v457 = vunpack.c.l.b16 %v386
    %v458 = vunpack.c.l.b16 %v387
    %v459 = vunpack.c.l.b16 %v388
    %v460 = vpack.c.b16 %v429, %v428
    %v461 = vpack.c.b16 %v431, %v430
    %v462 = vpack.c.b16 %v433, %v432
    %v463 = vpack.c.b16 %v435, %v434
    %v464 = vpack.c.b16 %v437, %v436
    %v465 = vpack.c.b16 %v439, %v438
    %v466 = vpack.c.b16 %v441, %v440
    %v467 = vpack.c.b16 %v443, %v442
    %v468 = vpack.c.b16 %v445, %v444
    %v469 = vpack.c.b16 %v447, %v446
    %v470 = vpack.c.b16 %v449, %v448
    %v471 = vpack.c.b16 %v451, %v450
    %v472 = vpack.c.b16 %v453, %v452
    %v473 = vpack.c.b16 %v455, %v454
    %v474 = vpack.c.b16 %v457, %v456
    %v475 = vpack.c.b16 %v459, %v458
    %492 = vmatprep.subr.bf16.mxu0 0
    %493 = vmatpush1.bf16.msra.mxu0 %v467
    %494 = vmatprep.subr.bf16.mxu0 0
    %495 = vmatpush1.bf16.msra.mxu0 %v466
    %496 = vmatprep.subr.bf16.mxu0 0
    %497 = vmatpush1.bf16.msra.mxu0 %v465
    %498 = vmatprep.subr.bf16.mxu0 0
    %499 = vmatpush1.bf16.msra.mxu0 %v464
    %500 = vmatprep.subr.bf16.mxu0 0
    %501 = vmatpush1.bf16.msra.mxu0 %v463
    %502 = vmatprep.subr.bf16.mxu0 0
    %503 = vmatpush1.bf16.msra.mxu0 %v462
    %504 = vmatprep.subr.bf16.mxu0 0
    %505 = vmatpush1.bf16.msra.mxu0 %v461
    %506 = vmatprep.subr.bf16.mxu0 0
    %507 = vmatpush1.bf16.msra.mxu0 %v460
    %508 = vmatprep.subr.bf16.mxu0 0
    %509 = vmatpush2.bf16.msra.mxu0 %v475
    %510 = vmatprep.subr.bf16.mxu0 0
    %511 = vmatpush2.bf16.msra.mxu0 %v474
    %512 = vmatprep.subr.bf16.mxu0 0
    %513 = vmatpush2.bf16.msra.mxu0 %v473
    %514 = vmatprep.subr.bf16.mxu0 0
    %515 = vmatpush2.bf16.msra.mxu0 %v472
    %516 = vmatprep.subr.bf16.mxu0 0
    %517 = vmatpush2.bf16.msra.mxu0 %v471
    %518 = vmatprep.subr.bf16.mxu0 0
    %519 = vmatpush2.bf16.msra.mxu0 %v470
    %520 = vmatprep.subr.bf16.mxu0 0
    %521 = vmatpush2.bf16.msra.mxu0 %v469
    %522 = vmatprep.subr.bf16.mxu0 0
    %523 = vmatpush2.bf16.msra.mxu0 %v468
    %524 = vmatprep.mubr.bf16.mxu0 %v342
    %525 = vmatmul.mubr.bf16.gmra.mxu0 %v341
    %v526 = vpop.f32.mrf.mxu0
    %v527 = vadd.f32 %v394, %v526
    %v528 = vpop.f32.mrf.mxu0
    %v529 = vpop.f32.mrf.mxu0
    %v530 = vadd.f32 %v394, %v529
    %v531 = vpop.f32.mrf.mxu0
    %532 = vmatprep.mubr.bf16.mxu0 %v344
    %533 = vmatmul.mubr.bf16.gmra.mxu0 %v343
    %v534 = vpop.f32.mrf.mxu0
    %v535 = vadd.f32 %v394, %v534
    %v536 = vpop.f32.mrf.mxu0
    %v537 = vpop.f32.mrf.mxu0
    %v538 = vadd.f32 %v394, %v537
    %v539 = vpop.f32.mrf.mxu0
    %540 = vmatprep.mubr.bf16.mxu0 %v346
    %541 = vmatmul.mubr.bf16.gmra.mxu0 %v345
    %v542 = vpop.f32.mrf.mxu0
    %v543 = vadd.f32 %v394, %v542
    %v544 = vpop.f32.mrf.mxu0
    %v545 = vpop.f32.mrf.mxu0
    %v546 = vadd.f32 %v394, %v545
    %v547 = vpop.f32.mrf.mxu0
    %548 = vmatprep.mubr.bf16.mxu0 %v348
    %549 = vmatmul.mubr.bf16.gmra.mxu0 %v347
    %v550 = vpop.f32.mrf.mxu0
    %v551 = vadd.f32 %v394, %v550
    %v552 = vpop.f32.mrf.mxu0
    %v553 = vpop.f32.mrf.mxu0
    %v554 = vadd.f32 %v394, %v553
    %v555 = vpop.f32.mrf.mxu0
    %556 = vmatprep.mubr.bf16.mxu0 %v350
    %557 = vmatmul.mubr.bf16.gmra.mxu0 %v349
    %v558 = vpop.f32.mrf.mxu0
    %v559 = vadd.f32 %v394, %v558
    %v560 = vpop.f32.mrf.mxu0
    %v561 = vpop.f32.mrf.mxu0
    %v562 = vadd.f32 %v394, %v561
    %v563 = vpop.f32.mrf.mxu0
    %564 = vmatprep.mubr.bf16.mxu0 %v352
    %565 = vmatmul.mubr.bf16.gmra.mxu0 %v351
    %v566 = vpop.f32.mrf.mxu0
    %v567 = vadd.f32 %v394, %v566
    %v568 = vpop.f32.mrf.mxu0
    %v569 = vpop.f32.mrf.mxu0
    %v570 = vadd.f32 %v394, %v569
    %v571 = vpop.f32.mrf.mxu0
    %572 = vmatprep.mubr.bf16.mxu0 %v354
    %573 = vmatmul.mubr.bf16.gmra.mxu0 %v353
    %v574 = vpop.f32.mrf.mxu0
    %v575 = vadd.f32 %v394, %v574
    %v576 = vpop.f32.mrf.mxu0
    %v577 = vpop.f32.mrf.mxu0
    %v578 = vadd.f32 %v394, %v577
    %v579 = vpop.f32.mrf.mxu0
    %580 = vmatprep.mubr.bf16.mxu0 %v356
    %581 = vmatmul.mubr.bf16.gmra.mxu0 %v355
    %v582 = vpop.f32.mrf.mxu0
    %v583 = vadd.f32 %v394, %v582
    %v584 = vpop.f32.mrf.mxu0
    %v585 = vpop.f32.mrf.mxu0
    %v586 = vadd.f32 %v394, %v585
    %v587 = vpop.f32.mrf.mxu0
    %588 = vdwg.mxu0
    %v589 = vmax.f32 %v527, 0.0
    %v590 = vmax.f32 %v530, 0.0
    %v591 = vmax.f32 %v535, 0.0
    %v592 = vmax.f32 %v538, 0.0
    %v593 = vmax.f32 %v543, 0.0
    %v594 = vmax.f32 %v546, 0.0
    %v595 = vmax.f32 %v551, 0.0
    %v596 = vmax.f32 %v554, 0.0
    %v597 = vmax.f32 %v559, 0.0
    %v598 = vmax.f32 %v562, 0.0
    %v599 = vmax.f32 %v567, 0.0
    %v600 = vmax.f32 %v570, 0.0
    %v601 = vmax.f32 %v575, 0.0
    %v602 = vmax.f32 %v578, 0.0
    %v603 = vmax.f32 %v583, 0.0
    %v604 = vmax.f32 %v586, 0.0
    %v605 = vpack.c.bf16 %v590, %v589
    %v606 = vpack.c.bf16 %v592, %v591
    %v607 = vpack.c.bf16 %v594, %v593
    %v608 = vpack.c.bf16 %v596, %v595
    %v609 = vpack.c.bf16 %v598, %v597
    %v610 = vpack.c.bf16 %v600, %v599
    %v611 = vpack.c.bf16 %v602, %v601
    %v612 = vpack.c.bf16 %v604, %v603
    %v613 = vld [vmem:[%s5] sm:$0xf]
    %v614 = vld [vmem:[%s5 + $0x4] sm:$0xf]
    %v615 = vld [vmem:[%s5 + $0x8] sm:$0xf]
    %v616 = vld [vmem:[%s5 + $0xc] sm:$0xf]
    %v617 = vld [vmem:[%s5 + $0x10] sm:$0xf]
    %v618 = vld [vmem:[%s5 + $0x14] sm:$0xf]
    %v619 = vld [vmem:[%s5 + $0x18] sm:$0xf]
    %v620 = vld [vmem:[%s5 + $0x1c] sm:$0xf]
    %v621 = vld [vmem:[%s5 + $0x20] sm:$0xf]
    %v622 = vld [vmem:[%s5 + $0x24] sm:$0xf]
    %v623 = vld [vmem:[%s5 + $0x28] sm:$0xf]
    %v624 = vld [vmem:[%s5 + $0x2c] sm:$0xf]
    %v625 = vld [vmem:[%s5 + $0x30] sm:$0xf]
    %v626 = vld [vmem:[%s5 + $0x34] sm:$0xf]
    %v627 = vld [vmem:[%s5 + $0x38] sm:$0xf]
    %v628 = vld [vmem:[%s5 + $0x3c] sm:$0xf]
    %v629 = vld [vmem:[%s6] sm:$0x1]
    %v631 = vlaneseq
    %v632 = vshrl.u32 %v631, 7
    %v633 = vsub.s32 0, %v632
    %v634 = vrot.slane %v629, %v633
    %v652 = vunpack.c.l.b16 %v613
    %v653 = vunpack.c.l.b16 %v614
    %v654 = vunpack.c.l.b16 %v615
    %v655 = vunpack.c.l.b16 %v616
    %v656 = vunpack.c.l.b16 %v617
    %v657 = vunpack.c.l.b16 %v618
    %v658 = vunpack.c.l.b16 %v619
    %v659 = vunpack.c.l.b16 %v620
    %v660 = vunpack.c.l.b16 %v621
    %v661 = vunpack.c.l.b16 %v622
    %v662 = vunpack.c.l.b16 %v623
    %v663 = vunpack.c.l.b16 %v624
    %v664 = vunpack.c.l.b16 %v625
    %v665 = vunpack.c.l.b16 %v626
    %v666 = vunpack.c.l.b16 %v627
    %v667 = vunpack.c.l.b16 %v628
    %v668 = vpack.c.b16 %v653, %v652
    %v669 = vpack.c.b16 %v655, %v654
    %v670 = vpack.c.b16 %v657, %v656
    %v671 = vpack.c.b16 %v659, %v658
    %v672 = vpack.c.b16 %v661, %v660
    %v673 = vpack.c.b16 %v663, %v662
    %v674 = vpack.c.b16 %v665, %v664
    %v675 = vpack.c.b16 %v667, %v666
    %684 = vmatprep.subr.bf16.mxu0 0
    %685 = vmatpush1.bf16.msra.mxu0 %v675
    %686 = vmatprep.subr.bf16.mxu0 0
    %687 = vmatpush1.bf16.msra.mxu0 %v674
    %688 = vmatprep.subr.bf16.mxu0 0
    %689 = vmatpush1.bf16.msra.mxu0 %v673
    %690 = vmatprep.subr.bf16.mxu0 0
    %691 = vmatpush1.bf16.msra.mxu0 %v672
    %692 = vmatprep.subr.bf16.mxu0 0
    %693 = vmatpush1.bf16.msra.mxu0 %v671
    %694 = vmatprep.subr.bf16.mxu0 0
    %695 = vmatpush1.bf16.msra.mxu0 %v670
    %696 = vmatprep.subr.bf16.mxu0 0
    %697 = vmatpush1.bf16.msra.mxu0 %v669
    %698 = vmatprep.subr.bf16.mxu0 0
    %699 = vmatpush1.bf16.msra.mxu0 %v668
    %700 = vmatprep.subr.bf16.mxu0 0
    %701 = vmatpush2.bf16.msra.mxu0 0
    %702 = vmatprep.subr.bf16.mxu0 0
    %703 = vmatpush2.bf16.msra.mxu0 0
    %704 = vmatprep.subr.bf16.mxu0 0
    %705 = vmatpush2.bf16.msra.mxu0 0
    %706 = vmatprep.subr.bf16.mxu0 0
    %707 = vmatpush2.bf16.msra.mxu0 0
    %708 = vmatprep.subr.bf16.mxu0 0
    %709 = vmatpush2.bf16.msra.mxu0 0
    %710 = vmatprep.subr.bf16.mxu0 0
    %711 = vmatpush2.bf16.msra.mxu0 0
    %712 = vmatprep.subr.bf16.mxu0 0
    %713 = vmatpush2.bf16.msra.mxu0 0
    %714 = vmatprep.subr.bf16.mxu0 0
    %715 = vmatpush2.bf16.msra.mxu0 0
    %716 = vmatprep.mubr.bf16.mxu0 0
    %717 = vmatmul.mubr.bf16.gmra.mxu0 %v605
    %v718 = vpop.f32.mrf.mxu0
    %v719 = vadd.f32 %v634, %v718
    %v720 = vpop.f32.mrf.mxu0
    %v721 = vpop.f32.mrf.mxu0
    %v722 = vadd.f32 %v634, %v721
    %v723 = vpop.f32.mrf.mxu0
    %724 = vmatprep.mubr.bf16.mxu0 0
    %725 = vmatmul.mubr.bf16.gmra.mxu0 %v606
    %v726 = vpop.f32.mrf.mxu0
    %v727 = vadd.f32 %v634, %v726
    %v728 = vpop.f32.mrf.mxu0
    %v729 = vpop.f32.mrf.mxu0
    %v730 = vadd.f32 %v634, %v729
    %v731 = vpop.f32.mrf.mxu0
    %732 = vmatprep.mubr.bf16.mxu0 0
    %733 = vmatmul.mubr.bf16.gmra.mxu0 %v607
    %v734 = vpop.f32.mrf.mxu0
    %v735 = vadd.f32 %v634, %v734
    %v736 = vpop.f32.mrf.mxu0
    %v737 = vpop.f32.mrf.mxu0
    %v738 = vadd.f32 %v634, %v737
    %v739 = vpop.f32.mrf.mxu0
    %740 = vmatprep.mubr.bf16.mxu0 0
    %741 = vmatmul.mubr.bf16.gmra.mxu0 %v608
    %v742 = vpop.f32.mrf.mxu0
    %v743 = vadd.f32 %v634, %v742
    %v744 = vpop.f32.mrf.mxu0
    %v745 = vpop.f32.mrf.mxu0
    %v746 = vadd.f32 %v634, %v745
    %v747 = vpop.f32.mrf.mxu0
    %748 = vmatprep.mubr.bf16.mxu0 0
    %749 = vmatmul.mubr.bf16.gmra.mxu0 %v609
    %v750 = vpop.f32.mrf.mxu0
    %v751 = vadd.f32 %v634, %v750
    %v752 = vpop.f32.mrf.mxu0
    %v753 = vpop.f32.mrf.mxu0
    %v754 = vadd.f32 %v634, %v753
    %v755 = vpop.f32.mrf.mxu0
    %756 = vmatprep.mubr.bf16.mxu0 0
    %757 = vmatmul.mubr.bf16.gmra.mxu0 %v610
    %v758 = vpop.f32.mrf.mxu0
    %v759 = vadd.f32 %v634, %v758
    %v760 = vpop.f32.mrf.mxu0
    %v761 = vpop.f32.mrf.mxu0
    %v762 = vadd.f32 %v634, %v761
    %v763 = vpop.f32.mrf.mxu0
    %764 = vmatprep.mubr.bf16.mxu0 0
    %765 = vmatmul.mubr.bf16.gmra.mxu0 %v611
    %v766 = vpop.f32.mrf.mxu0
    %v767 = vadd.f32 %v634, %v766
    %v768 = vpop.f32.mrf.mxu0
    %v769 = vpop.f32.mrf.mxu0
    %v770 = vadd.f32 %v634, %v769
    %v771 = vpop.f32.mrf.mxu0
    %772 = vmatprep.mubr.bf16.mxu0 0
    %773 = vmatmul.mubr.bf16.gmra.mxu0 %v612
    %v774 = vpop.f32.mrf.mxu0
    %v775 = vadd.f32 %v634, %v774
    %v776 = vpop.f32.mrf.mxu0
    %v777 = vpop.f32.mrf.mxu0
    %v778 = vadd.f32 %v634, %v777
    %v779 = vpop.f32.mrf.mxu0
    %780 = vdwg.mxu0
    %v781 = vmax.f32 %v719, 0.0
    %v782 = vmax.f32 %v722, 0.0
    %v783 = vmax.f32 %v727, 0.0
    %v784 = vmax.f32 %v730, 0.0
    %v785 = vmax.f32 %v735, 0.0
    %v786 = vmax.f32 %v738, 0.0
    %v787 = vmax.f32 %v743, 0.0
    %v788 = vmax.f32 %v746, 0.0
    %v789 = vmax.f32 %v751, 0.0
    %v790 = vmax.f32 %v754, 0.0
    %v791 = vmax.f32 %v759, 0.0
    %v792 = vmax.f32 %v762, 0.0
    %v793 = vmax.f32 %v767, 0.0
    %v794 = vmax.f32 %v770, 0.0
    %v795 = vmax.f32 %v775, 0.0
    %v796 = vmax.f32 %v778, 0.0
    %v797 = vld [vmem:[%s7] sm:$0x1]
    %v799 = vlaneseq
    %v800 = vshrl.u32 %v799, 7
    %v801 = vsub.s32 0, %v800
    %v802 = vrot.slane %v797, %v801
    %v804 = vmul.f32 %v781, %v802
    %v805 = vmul.f32 %v782, %v802
    %v806 = vmul.f32 %v783, %v802
    %v807 = vmul.f32 %v784, %v802
    %v808 = vmul.f32 %v785, %v802
    %v809 = vmul.f32 %v786, %v802
    %v810 = vmul.f32 %v787, %v802
    %v811 = vmul.f32 %v788, %v802
    %v812 = vmul.f32 %v789, %v802
    %v813 = vmul.f32 %v790, %v802
    %v814 = vmul.f32 %v791, %v802
    %v815 = vmul.f32 %v792, %v802
    %v816 = vmul.f32 %v793, %v802
    %v817 = vmul.f32 %v794, %v802
    %v818 = vmul.f32 %v795, %v802
    %v819 = vmul.f32 %v796, %v802
    %vm820 = vcmask 523264
    %v821 = vsel %vm820, %v804, 0.0
    %822 = vadd.xlane.f32.xlu0 %v821
    %v823 = vpop.xlane.xlu0 %822
    %v824 = vsel %vm820, %v805, 0.0
    %825 = vadd.xlane.f32.xlu0 %v824
    %v826 = vpop.xlane.xlu0 %825
    %v827 = vsel %vm820, %v806, 0.0
    %828 = vadd.xlane.f32.xlu0 %v827
    %v829 = vpop.xlane.xlu0 %828
    %v830 = vsel %vm820, %v807, 0.0
    %831 = vadd.xlane.f32.xlu0 %v830
    %v832 = vpop.xlane.xlu0 %831
    %v833 = vsel %vm820, %v808, 0.0
    %834 = vadd.xlane.f32.xlu0 %v833
    %v835 = vpop.xlane.xlu0 %834
    %v836 = vsel %vm820, %v809, 0.0
    %837 = vadd.xlane.f32.xlu0 %v836
    %v838 = vpop.xlane.xlu0 %837
    %v839 = vsel %vm820, %v810, 0.0
    %840 = vadd.xlane.f32.xlu0 %v839
    %v841 = vpop.xlane.xlu0 %840
    %v842 = vsel %vm820, %v811, 0.0
    %843 = vadd.xlane.f32.xlu0 %v842
    %v844 = vpop.xlane.xlu0 %843
    %v845 = vsel %vm820, %v812, 0.0
    %846 = vadd.xlane.f32.xlu0 %v845
    %v847 = vpop.xlane.xlu0 %846
    %v848 = vsel %vm820, %v813, 0.0
    %849 = vadd.xlane.f32.xlu0 %v848
    %v850 = vpop.xlane.xlu0 %849
    %v851 = vsel %vm820, %v814, 0.0
    %852 = vadd.xlane.f32.xlu0 %v851
    %v853 = vpop.xlane.xlu0 %852
    %v854 = vsel %vm820, %v815, 0.0
    %855 = vadd.xlane.f32.xlu0 %v854
    %v856 = vpop.xlane.xlu0 %855
    %v857 = vsel %vm820, %v816, 0.0
    %858 = vadd.xlane.f32.xlu0 %v857
    %v859 = vpop.xlane.xlu0 %858
    %v860 = vsel %vm820, %v817, 0.0
    %861 = vadd.xlane.f32.xlu0 %v860
    %v862 = vpop.xlane.xlu0 %861
    %v863 = vsel %vm820, %v818, 0.0
    %864 = vadd.xlane.f32.xlu0 %v863
    %v865 = vpop.xlane.xlu0 %864
    %v866 = vsel %vm820, %v819, 0.0
    %867 = vadd.xlane.f32.xlu0 %v866
    %v868 = vpop.xlane.xlu0 %867
    %v869 = vld [vmem:[#allocation2] sm:$0x1]
    %v871 = vlaneseq
    %v872 = vshrl.u32 %v871, 7
    %v873 = vsub.s32 0, %v872
    %v874 = vrot.slane %v869, %v873
    %v876 = vadd.f32 %v823, %v874
    %v877 = vadd.f32 %v826, %v874
    %v878 = vadd.f32 %v829, %v874
    %v879 = vadd.f32 %v832, %v874
    %v880 = vadd.f32 %v835, %v874
    %v881 = vadd.f32 %v838, %v874
    %v882 = vadd.f32 %v841, %v874
    %v883 = vadd.f32 %v844, %v874
    %v884 = vadd.f32 %v847, %v874
    %v885 = vadd.f32 %v850, %v874
    %v886 = vadd.f32 %v853, %v874
    %v887 = vadd.f32 %v856, %v874
    %v888 = vadd.f32 %v859, %v874
    %v889 = vadd.f32 %v862, %v874
    %v890 = vadd.f32 %v865, %v874
    %v891 = vadd.f32 %v868, %v874
    %vm892 = vcmask 7168
    %893 = vst.msk [vmem:[%s9] sm:$0xff] %vm892, %v876
    %894 = vst.msk [vmem:[%s9 + $0x8] sm:$0xff] %vm892, %v877
    %895 = vst.msk [vmem:[%s9 + $0x10] sm:$0xff] %vm892, %v878
    %896 = vst.msk [vmem:[%s9 + $0x18] sm:$0xff] %vm892, %v879
    %897 = vst.msk [vmem:[%s9 + $0x20] sm:$0xff] %vm892, %v880
    %898 = vst.msk [vmem:[%s9 + $0x28] sm:$0xff] %vm892, %v881
    %899 = vst.msk [vmem:[%s9 + $0x30] sm:$0xff] %vm892, %v882
    %900 = vst.msk [vmem:[%s9 + $0x38] sm:$0xff] %vm892, %v883
    %901 = vst.msk [vmem:[%s9 + $0x40] sm:$0xff] %vm892, %v884
    %902 = vst.msk [vmem:[%s9 + $0x48] sm:$0xff] %vm892, %v885
    %903 = vst.msk [vmem:[%s9 + $0x50] sm:$0xff] %vm892, %v886
    %904 = vst.msk [vmem:[%s9 + $0x58] sm:$0xff] %vm892, %v887
    %905 = vst.msk [vmem:[%s9 + $0x60] sm:$0xff] %vm892, %v888
    %906 = vst.msk [vmem:[%s9 + $0x68] sm:$0xff] %vm892, %v889
    %907 = vst.msk [vmem:[%s9 + $0x70] sm:$0xff] %vm892, %v890
    %908 = vst.msk [vmem:[%s9 + $0x78] sm:$0xff] %vm892, %v891
    // Predicated region
    $region46: #{tpu_custom_call.1} parent=1 // pred_check
      _
    $region47: #{tpu_custom_call.1} parent=1 // pred_check_branch
      %910 = sbr.rel (0) target = $region49
    $region48: #{tpu_custom_call.1} parent=1 // pred_region
      _
    $region49: #{tpu_custom_call.1} parent=1 // pred_fallthru
      _
    // Predicated region
    $region50: #{tpu_custom_call.1} parent=1 // pred_check
      _
    $region51: #{tpu_custom_call.1} parent=1 // pred_check_branch
      %912 = sbr.rel (0) target = $region53
    $region52: #{tpu_custom_call.1} parent=1 // pred_region
      _
    $region53: #{tpu_custom_call.1} parent=1 // pred_fallthru
      _
    %913 = vsyncpa [#allocation4], 1
    %914 = vsyncpa [#allocation6], 1

</llo_original>
